<compile_context>
chip_gen: v7x
topology: tpu7x:2x2x1
jax: 0.10.0
libtpu: 0.0.40
codegen_flags: <defaults>
</compile_context>

<pallas_src>
import jax
import jax.numpy as jnp
from jax.experimental import pallas as pl
from jax.experimental.pallas import tpu as pltpu


# --------------------------------------------------------------------------
# Kernels
# --------------------------------------------------------------------------
def _make_single_kernel(inv_hw):
    """Whole spatial extent in one block: plain lane-axis reduce + scale."""

    def kernel(x_ref, o_ref):
        # x_ref: (N, TC, HW) contiguous NCHW slab; reduce over HW (lanes/XLU),
        # widening to f32 inside the reduce (no materialized f32 copy).
        s = jnp.sum(x_ref[...], axis=-1, dtype=jnp.float32)
        o_ref[...] = (s * inv_hw).astype(o_ref.dtype)

    return kernel


def _make_acc_kernel(inv_hw):
    """HW is tiled over grid axis 1; accumulate partial sums in f32 scratch."""

    def kernel(x_ref, o_ref, acc_ref):
        k = pl.program_id(1)

        @pl.when(k == 0)
        def _():
            acc_ref[...] = jnp.zeros_like(acc_ref)

        acc_ref[...] += jnp.sum(x_ref[...], axis=-1, dtype=jnp.float32)

        @pl.when(k == pl.num_programs(1) - 1)
        def _():
            o_ref[...] = (acc_ref[...] * inv_hw).astype(o_ref.dtype)

    return kernel


# --------------------------------------------------------------------------
# Tiling helpers
# --------------------------------------------------------------------------
def _default_budgets():
    """(max_tile_bytes, vmem_limit_bytes), generation aware with safe fallback."""
    try:
        vmem_bytes = pltpu.get_tpu_info().vmem_capacity_bytes
    except Exception:
        vmem_bytes = 64 * 1024 * 1024  # assume the smallest (v7x per-TC)
    if vmem_bytes >= 128 * 1024 * 1024:
        # v5e / v6e: plenty of VMEM -> bigger tiles, fewer grid steps.
        return 24 * 1024 * 1024, 96 * 1024 * 1024
    # v7x (64 MiB physical) or unknown: stay conservative.
    return 8 * 1024 * 1024, 32 * 1024 * 1024


def _pick_channel_tile(n, c, hw, itemsize, max_tile_bytes):
    """Largest multiple of 128 dividing C whose (n, tc, hw) block fits the budget."""
    if c % 128 != 0:
        # Ragged channel count: one full-width block (equals the full dim,
        # which satisfies the (8,128) BlockSpec rule).
        return c
    per_channel = n * hw * itemsize
    fit = max_tile_bytes // per_channel if per_channel > 0 else c
    tc = None
    t = 128
    while t <= c:
        if c % t == 0 and t <= fit:
            tc = t
        t += 128
    if tc is None:
        tc = 128  # minimum lane-aligned tile; HW tiling below handles the budget
    return tc


def _pick_hw_tile(n, tc, hw, itemsize, max_tile_bytes):
    """Largest multiple of 128 dividing HW whose (n, tc, thw) block fits (hw % 128 == 0)."""
    per_hw = n * tc * itemsize
    fit = (max_tile_bytes // per_hw) // 128 * 128 if per_hw > 0 else hw
    fit = max(fit, 128)
    thw = None
    t = 128
    while t <= hw:
        if hw % t == 0 and t <= fit:
            thw = t
        t += 128
    if thw is None:
        thw = 128
    return thw


# --------------------------------------------------------------------------
# Wrapper
# --------------------------------------------------------------------------
def spatial_mean(x, *, max_tile_bytes=None, vmem_limit_bytes=None):
    """Equivalent of x.mean([2, 3]) for an NCHW tensor (global average pool)."""
    n, c, h, w = x.shape
    hw = h * w
    itemsize = jnp.dtype(x.dtype).itemsize

    default_tile, default_vmem = _default_budgets()
    if max_tile_bytes is None:
        max_tile_bytes = default_tile
    if vmem_limit_bytes is None:
        vmem_limit_bytes = default_vmem

    # Native NCHW read: (N, C, HW) reshape is free (HW already contiguous),
    # so there is no extra transpose kernel / HBM round-trip in the wrapper.
    x3 = x.reshape(n, c, hw)
    inv_hw = 1.0 / float(hw)  # always the FULL spatial size

    tc = _pick_channel_tile(n, c, hw, itemsize, max_tile_bytes)
    total_bytes = n * c * hw * itemsize
    if tc == c and c % 256 == 0 and total_bytes > (8 << 20):
        # Bandwidth-bound sizes: make sure the parallel axis has >= 2 steps so
        # both v7x TensorCores can pull from HBM concurrently.
        tc = c // 2
    num_c = c // tc
    block_bytes = n * tc * hw * itemsize

    if block_bytes <= max_tile_bytes or hw % 128 != 0:
        # Common case: whole HW per block, grid over channel tiles only.
        out = pl.pallas_call(
            _make_single_kernel(inv_hw),
            out_shape=jax.ShapeDtypeStruct((n, c), x.dtype),
            grid_spec=pltpu.PrefetchScalarGridSpec(
                num_scalar_prefetch=0,
                grid=(num_c,),
                in_specs=[pl.BlockSpec((n, tc, hw), lambda j: (0, j, 0))],
                out_specs=pl.BlockSpec((n, tc), lambda j: (0, j)),
            ),
            compiler_params=pltpu.CompilerParams(
                dimension_semantics=("parallel",),
                vmem_limit_bytes=vmem_limit_bytes,
            ),
        )(x3)
    else:
        # Large spatial extents: tile HW on an "arbitrary" reduction axis and
        # accumulate in an f32 VMEM scratch (keeps tiles under the VMEM budget).
        thw = _pick_hw_tile(n, tc, hw, itemsize, max_tile_bytes)
        num_hw = hw // thw
        out = pl.pallas_call(
            _make_acc_kernel(inv_hw),
            out_shape=jax.ShapeDtypeStruct((n, c), x.dtype),
            grid_spec=pltpu.PrefetchScalarGridSpec(
                num_scalar_prefetch=0,
                grid=(num_c, num_hw),
                in_specs=[pl.BlockSpec((n, tc, thw), lambda j, k: (0, j, k))],
                out_specs=pl.BlockSpec((n, tc), lambda j, k: (0, j)),
                scratch_shapes=[pltpu.VMEM((n, tc), jnp.float32)],
            ),
            compiler_params=pltpu.CompilerParams(
                dimension_semantics=("parallel", "arbitrary"),
                vmem_limit_bytes=vmem_limit_bytes,
            ),
        )(x3)

    return out


# --------------------------------------------------------------------------
# Self-test
# --------------------------------------------------------------------------
if __name__ == "__main__":
    key = jax.random.PRNGKey(0)

    # 1) Small shape consistent with the module's NCHW global-average pool.
    N, C, H, W = 2, 4, 16, 16
    x = jax.random.normal(key, (N, C, H, W), dtype=jnp.float32)
    y = spatial_mean(x)
    jax.block_until_ready(y)
    ref = jnp.mean(x, axis=(2, 3))
    assert y.shape == (N, C)
    assert jnp.allclose(y, ref, atol=1e-5, rtol=1e-5)

    # 2) The module's real shape: single transpose-free, single-step call.
    k2 = jax.random.PRNGKey(1)
    x2 = jax.random.normal(k2, (1, 2048, 7, 7), dtype=jnp.float32)
    y2 = spatial_mean(x2)
    jax.block_until_ready(y2)
    ref2 = jnp.mean(x2, axis=(2, 3))
    assert y2.shape == (1, 2048)
    assert jnp.allclose(y2, ref2, atol=1e-5, rtol=1e-5)

    # 3) Small tile budget -> multiple channel tiles (gridded contiguous slabs).
    k3 = jax.random.PRNGKey(2)
    x3 = jax.random.normal(k3, (1, 512, 7, 7), dtype=jnp.float32)
    y3 = spatial_mean(x3, max_tile_bytes=7 * 7 * 128 * 4)  # tc=128, 4 grid steps
    jax.block_until_ready(y3)
    ref3 = jnp.mean(x3, axis=(2, 3))
    assert jnp.allclose(y3, ref3, atol=1e-5, rtol=1e-5)

    # 4) Tiny budget + 128-divisible HW -> HW-tiled accumulation path.
    k4 = jax.random.PRNGKey(3)
    x4 = jax.random.normal(k4, (1, 256, 16, 16), dtype=jnp.float32)
    y4 = spatial_mean(x4, max_tile_bytes=64 * 1024)  # forces (tc=128, thw=128) x 2 HW steps
    jax.block_until_ready(y4)
    ref4 = jnp.mean(x4, axis=(2, 3))
    assert jnp.allclose(y4, ref4, atol=1e-5, rtol=1e-5)

    # 5) bf16 input: widened to f32 inside the reduce, cast back on store.
    k5 = jax.random.PRNGKey(4)
    x5 = jax.random.normal(k5, (1, 256, 8, 8), dtype=jnp.bfloat16)
    y5 = spatial_mean(x5)
    jax.block_until_ready(y5)
    ref5 = jnp.mean(x5.astype(jnp.float32), axis=(2, 3)).astype(jnp.bfloat16)
    assert jnp.allclose(y5.astype(jnp.float32), ref5.astype(jnp.float32),
                        atol=2e-2, rtol=2e-2)

    print("KERNEL_OK")
</pallas_src>

<mosaic_0001>
module attributes {stable_mosaic.version = 11 : i64} {
  func.func @kernel(%arg0: i32, %arg1: memref<2x4x256xf32, #tpu.memory_space<vmem>>, %arg2: memref<2x4xf32, #tpu.memory_space<vmem>>) attributes {dimension_semantics = [#tpu.dimension_semantics<parallel>], iteration_bounds = array<i64: 1>, scalar_prefetch = 0 : i64, scratch_operands = 0 : i64, tpu.core_type = #tpu.core_type<tc>, window_params = [{transform_indices = @transform_0, window_bounds = array<i64: 2, 4, 256>}, {transform_indices = @transform_1, window_bounds = array<i64: 2, 4>}]} {
    %c0 = arith.constant 0 : index
    %c0_0 = arith.constant 0 : index
    %c0_1 = arith.constant 0 : index
    %0 = vector.load %arg1[%c0, %c0_0, %c0_1] : memref<2x4x256xf32, #tpu.memory_space<vmem>>, vector<2x4x256xf32>
    %cst = arith.constant dense<0.000000e+00> : vector<2x4xf32>
    %1 = vector.multi_reduction <add>, %0, %cst [2] : vector<2x4x256xf32> to vector<2x4xf32>
    %cst_2 = arith.constant 3.906250e-03 : f32
    %2 = vector.broadcast %cst_2 : f32 to vector<2x4xf32>
    %3 = arith.mulf %1, %2 : vector<2x4xf32>
    %c0_3 = arith.constant 0 : index
    %c0_4 = arith.constant 0 : index
    %4 = vector.load %arg2[%c0_3, %c0_4] : memref<2x4xf32, #tpu.memory_space<vmem>>, vector<2x4xf32>
    tpu.vector_store %arg2[%c0_3, %c0_4], %3 {strides = array<i32>} : memref<2x4xf32, #tpu.memory_space<vmem>>, vector<2x4xf32>,
    return
  }
  func.func @transform_0(%arg0: i32) -> (i32, i32, i32) {
    %c0_i32 = arith.constant 0 : i32
    %c0_i32_0 = arith.constant 0 : i32
    %c0_i32_1 = arith.constant 0 : i32
    return %c0_i32, %arg0, %c0_i32_0 : i32, i32, i32
  }
  func.func @transform_1(%arg0: i32) -> (i32, i32) {
    %c0_i32 = arith.constant 0 : i32
    %c0_i32_0 = arith.constant 0 : i32
    return %c0_i32, %arg0 : i32, i32
  }
}

</mosaic_0001>

<llo_original>
// kernel: tpu_custom_call.1
$region0: #{tpu_custom_call.1}
  #allocation0 [shape = 'u32[]', space=smem, size = 0x4, offset = 0x4, fixed_abs, tag = 'smem constant byte address 0x4 - core index']
  #allocation1 [shape = 'u32[144,128]{1,0:T(1,128)}', space=vmem, size = 0x12000, scoped, tag = 'internal scratch']
  %s0 = inlined_call_operand.hbm [shape: f32[2,4,256], index: 0, kind: input, shape index: {}]
  %s1 = inlined_call_operand.hbm [shape: f32[2,4], index: 1, kind: output, shape index: {}]
  %s2 = sld [smem:[#allocation0]]
  $region18: #{tpu_custom_call.1} parent=0
    _
  %s4 = ssub.s32 1, %s2
  %s5 = scalar_select 0, %s4, %s2
  $region1: #{tpu_custom_call.1} parent=0
    #allocation2 [shape = 'u8[8192]{0}', space=vmem, size = 0x2000, scoped, tag = 'input window, operand 0, single buffered']
    #allocation3 [shape = 's32[1]{0}', space=sflag, size = 0x4, scoped, tag = 'scoped memory for tpu_custom_call.1']
    #allocation4 [shape = 's32[1]{0}', space=sflag, size = 0x4, scoped, tag = 'scoped memory for tpu_custom_call.1']
    #allocation5 [shape = 'u8[1024]{0}', space=vmem, size = 0x400, scoped, tag = 'output window, operand 0, single buffered']
    %6 = vsyncpa [#allocation3], 0
    %7 = vsyncpa [#allocation4], 0
    // Predicated region
    $region2: #{tpu_custom_call.1} parent=1 // pred_check
      _
    $region3: #{tpu_custom_call.1} parent=1 // pred_check_branch
      %9 = sbr.rel (0) target = $region5
    $region4: #{tpu_custom_call.1} parent=1 // pred_region
      %s11 = ssub.s32 256, 256
      %12 = vsyncadd [#allocation3], %s11
      %s13 = sshll.u32 [#allocation2], 4
      %s14 = int_to_ptr.vmem [resolvable:$true] %s13
      %19 = dma.hbm_to_vmem [thread:$0]  %s0, 256, %s14, [#allocation3], 128, 128, 8
    $region5: #{tpu_custom_call.1} parent=1 // pred_fallthru
      _
    // Predicated region
    $region6: #{tpu_custom_call.1} parent=1 // pred_check
      _
    $region7: #{tpu_custom_call.1} parent=1 // pred_check_branch
      %21 = sbr.rel (0) target = $region9
    $region8: #{tpu_custom_call.1} parent=1 // pred_region
      %22 = dma.done [#allocation3], 256
    $region9: #{tpu_custom_call.1} parent=1 // pred_fallthru
      _
    %v23 = vld [vmem:[#allocation2] sm:$0xff]
    %v24 = vld [vmem:[#allocation2 + $0x8] sm:$0xff]
    %v27 = vcombine.high %v23, %v23
    %v28 = vcombine.high %v24, %v24
    %vm31 = vcmask 1043456
    %v32 = vsel %vm31, %v23, 0.0
    %v33 = vsel %vm31, %v27, 0.0
    %v34 = vadd.f32 %v32, %v33
    %35 = vadd.xlane.f32.xlu0 %v34
    %v36 = vpop.xlane.xlu0 %35
    %v37 = vsel %vm31, %v24, 0.0
    %v38 = vsel %vm31, %v28, 0.0
    %v39 = vadd.f32 %v37, %v38
    %40 = vadd.xlane.f32.xlu0 %v39
    %v41 = vpop.xlane.xlu0 %40
    %v42 = vmul.f32 %v36, 0.00390625
    %v43 = vmul.f32 %v41, 0.00390625
    %v46 = vlaneseq
    %v47 = vand.u32 %v46, 127
    %v48 = vlaneseq
    %v49 = vshrl.u32 %v48, 7
    %v50 = vsub.s32 %v47, %v49
    %v51 = vrot.slane %v42, %v50
    %v52 = vlaneseq
    %v53 = vshrl.u32 %v52, 7
    %v54 = vsub.s32 %v47, %v53
    %v55 = vrot.slane %v43, %v54
    %vm56 = vcmask 1041409
    %v57 = vsel %vm56, %v55, %v51
    %vm59 = vcmask 25600
    %60 = vst.msk [vmem:[#allocation5] sm:$0x3] %vm59, %v57
    // Predicated region
    $region10: #{tpu_custom_call.1} parent=1 // pred_check
      _
    $region11: #{tpu_custom_call.1} parent=1 // pred_check_branch
      %62 = sbr.rel (0) target = $region13
    $region12: #{tpu_custom_call.1} parent=1 // pred_region
      %s64 = ssub.s32 32, 32
      %65 = vsyncadd [#allocation4], %s64
      %s67 = sshll.u32 [#allocation5], 4
      %s68 = int_to_ptr.vmem [resolvable:$true] %s67
      %70 = dma.vmem_to_hbm [thread:$0]  %s68, 32, %s1, [#allocation4]
    $region13: #{tpu_custom_call.1} parent=1 // pred_fallthru
      _
    // Predicated region
    $region14: #{tpu_custom_call.1} parent=1 // pred_check
      _
    $region15: #{tpu_custom_call.1} parent=1 // pred_check_branch
      %72 = sbr.rel (0) target = $region17
    $region16: #{tpu_custom_call.1} parent=1 // pred_region
      %73 = dma.done [#allocation4], 32
    $region17: #{tpu_custom_call.1} parent=1 // pred_fallthru
      _
    %74 = vsyncpa [#allocation3], 1
    %75 = vsyncpa [#allocation4], 1

</llo_original>
